<compile_context>
chip_gen: v5e
topology: v5e:2x2
jax: 0.10.0
libtpu: 0.0.40
codegen_flags: <defaults>
</compile_context>

<pallas_src>
import jax
import jax.numpy as jnp
from jax.experimental import pallas as pl
from jax.experimental.pallas import tpu as pltpu


# ---------------------------------------------------------------------------
# Kernel
# ---------------------------------------------------------------------------
def _attention_kernel(v_ref, q_ref, wv_ref, bv_ref, wq_ref, bq_ref, wl_ref,
                      out_ref):
    TB, K = out_ref.shape
    H = wv_ref.shape[1]

    # --- v projection: one MXU matmul over all TB*K rows (f32 accumulation).
    v_proj = jnp.maximum(
        jnp.dot(v_ref[...], wv_ref[...], preferred_element_type=jnp.float32)
        + bv_ref[...], 0.0)                                   # [TB*K, H] f32

    # --- q projection once per batch tile; fold the H->1 weight-norm row here
    #     so the rescale is [TB, H] VPU work instead of [TB, K, H].
    q_proj = jnp.maximum(
        jnp.dot(q_ref[...], wq_ref[...], preferred_element_type=jnp.float32)
        + bq_ref[...], 0.0)                                   # [TB, H] f32
    q_scaled = q_proj * wl_ref[...]                           # [TB, H] f32

    # (dropout is identity in eval mode)

    # --- logits[b,k] = sum_h v_proj[b,k,h] * q_scaled[b,h].  The scalar Linear
    #     bias is dropped: softmax over k is shift-invariant.
    logits = jnp.sum(v_proj.reshape(TB, K, H) * q_scaled[:, None, :], axis=-1)
    # TODO(synk): for realistic num_hid (e.g. 1024), tile H with a fori_loop
    #             accumulating partial logits to bound the f32 [TB*K, H]
    #             intermediates (matters on v7x's 64 MiB VMEM).

    # --- softmax over K on a [TB, K] slab (K on the lane axis); the divide
    #     goes to the EUP via the approximate reciprocal.
    m = jnp.max(logits, axis=-1, keepdims=True)
    e = jnp.exp(logits - m)
    s = jnp.sum(e, axis=-1, keepdims=True)
    out_ref[...] = (e * pl.reciprocal(s, approx=True)).astype(out_ref.dtype)


# ---------------------------------------------------------------------------
# Tiling / VMEM-budget helpers
# ---------------------------------------------------------------------------
def _vmem_limit_bytes():
    """Per-generation scoped-VMEM limit for CompilerParams (None = default)."""
    try:
        kind = jax.devices()[0].device_kind.lower()
    except Exception:  # pragma: no cover - defensive
        kind = ""
    if "v7" in kind:
        return 48 << 20        # v7x: 64 MiB physical per TensorCore
    if "v6" in kind:
        return 96 << 20        # v6e: 128 MiB physical
    if "v5" in kind or "v4" in kind:
        return 64 << 20        # v5e/v5p/v4: stay well inside physical VMEM
    return None                # unknown / older: keep the compiler default


def _pick_batch_tile(batch, k, vd, qd, h, in_bytes, block_budget_bytes,
                     min_steps=2):
    """Largest TB with TB | batch and (TB % 8 == 0 or TB == batch) whose
    per-grid-step VMEM footprint fits the budget, preferring >= min_steps grid
    steps so both v7x TensorCores get work (neutral on 1-TC chips)."""
    per_row = (2 * k * vd * in_bytes      # v block (double-buffered)
               + 2 * qd * in_bytes        # q block (double-buffered)
               + 2 * k * 4                # f32 out block (double-buffered)
               + 2 * k * h * 4)           # f32 v_proj / joint intermediates
    fixed = (vd * h + qd * h) * in_bytes + 3 * h * 4 + (256 << 10)  # weights+slack
    max_tb = max(1, (block_budget_bytes - fixed) // per_row)
    cands = [tb for tb in range(1, batch + 1)
             if batch % tb == 0 and (tb % 8 == 0 or tb == batch)]
    for pred in (
        lambda tb: tb <= max_tb and batch // tb >= min_steps,  # budget + >=2 steps
        lambda tb: tb <= max_tb,                               # batch too small
        lambda tb: True,                                       # budget too small
    ):
        sel = [tb for tb in cands if pred(tb)]
        if sel:
            return max(sel)
    return batch


def _weight_spec(shape, single_buffer):
    """BlockSpec for a weight that is resident (constant block index)."""
    ndim = len(shape)
    index_map = lambda *_: (0,) * ndim
    if single_buffer:
        # Single pipeline buffer: don't duplicate resident weights in VMEM.
        return pl.BlockSpec(shape, index_map, pipeline_mode=pl.Buffered(1))
    return pl.BlockSpec(shape, index_map)


# ---------------------------------------------------------------------------
# Wrapper
# ---------------------------------------------------------------------------
def new_attention_forward(v, q, params, *, batch_tile=None, use_bf16=True):
    """v: [B, K, Vd], q: [B, Qd] -> [B, K, 1] f32 (softmax over K).

    params = (Wv [Vd,H], bv [1,H], Wq [Qd,H], bq [1,H], Wl [H,1], bl [1,1]);
    bl is accepted for interface parity but not needed (softmax shift-invariant).
    """
    B, K, Vd = v.shape
    _, Qd = q.shape
    wv, bv, wq, bq, wl, _bl = params
    H = wv.shape[1]
    assert wl.shape[0] == H, "module requires q_dim == num_hid for the H->1 Linear"
    wl_row = wl.reshape(1, H).astype(jnp.float32)   # row layout for the VPU rescale

    in_dtype = jnp.bfloat16 if use_bf16 else v.dtype
    in_bytes = jnp.dtype(in_dtype).itemsize

    vmem_limit = _vmem_limit_bytes()
    block_budget = int(0.75 * (vmem_limit if vmem_limit is not None else (16 << 20)))

    TB = (_pick_batch_tile(B, K, Vd, Qd, H, in_bytes, block_budget)
          if batch_tile is None else batch_tile)
    assert B % TB == 0 and (TB % 8 == 0 or TB == B), (B, TB)

    # Flatten v so the kernel's MXU matmul needs no in-kernel relayout reshape.
    # (In a real model v/q would already be bf16; the cast here is wrapper glue.)
    v_in = v.reshape(B * K, Vd).astype(in_dtype)
    q_in = q.astype(in_dtype)
    wv_in = wv.astype(in_dtype)
    wq_in = wq.astype(in_dtype)

    cp_kwargs = dict(dimension_semantics=("parallel",))
    if vmem_limit is not None:
        cp_kwargs["vmem_limit_bytes"] = vmem_limit
    compiler_params = pltpu.CompilerParams(**cp_kwargs)

    def _build(single_buffer_weights):
        grid_spec = pltpu.PrefetchScalarGridSpec(
            num_scalar_prefetch=0,
            grid=(B // TB,),
            in_specs=[
                pl.BlockSpec((TB * K, Vd), lambda b: (b, 0)),   # v (flattened)
                pl.BlockSpec((TB, Qd),     lambda b: (b, 0)),   # q
                _weight_spec((Vd, H), single_buffer_weights),   # Wv (resident)
                _weight_spec((1, H),  single_buffer_weights),   # bv
                _weight_spec((Qd, H), single_buffer_weights),   # Wq
                _weight_spec((1, H),  single_buffer_weights),   # bq
                _weight_spec((1, H),  single_buffer_weights),   # Wl row
            ],
            out_specs=pl.BlockSpec((TB, K), lambda b: (b, 0)),  # [B, K] slab
        )
        return pl.pallas_call(
            _attention_kernel,
            out_shape=jax.ShapeDtypeStruct((B, K), jnp.float32),
            grid_spec=grid_spec,
            compiler_params=compiler_params,
        )

    args = (v_in, q_in, wv_in, bv, wq_in, bq, wl_row)
    try:
        out2d = jax.block_until_ready(_build(True)(*args))
    except Exception:
        # This jax/Mosaic build rejects pl.Buffered(1) on pallas_call specs;
        # fall back to default double-buffered weight specs (same numerics).
        out2d = _build(False)(*args)

    return out2d[:, :, None]              # [B, K, 1] to match the PyTorch module


# ---------------------------------------------------------------------------
# Parameter init + pure-JAX reference
# ---------------------------------------------------------------------------
def _weight_norm_effective(v_weight, g):
    # weight_norm(dim=None): W = g * V / ||V||_F  (g is a scalar)
    return g * v_weight / jnp.sqrt(jnp.sum(v_weight * v_weight))


def init_params(key, v_dim, q_dim, num_hid):
    ks = jax.random.split(key, 6)
    # torch Linear weights are [out, in]; init deterministically, then apply
    # weight_norm and pre-transpose to [in, out] for the kernel.
    wv_v = jax.random.normal(ks[0], (num_hid, v_dim), jnp.float32) * 0.1
    wq_v = jax.random.normal(ks[1], (num_hid, q_dim), jnp.float32) * 0.1
    wl_v = jax.random.normal(ks[2], (1, q_dim), jnp.float32) * 0.1
    bv = jax.random.normal(ks[3], (num_hid,), jnp.float32) * 0.05
    bq = jax.random.normal(ks[4], (num_hid,), jnp.float32) * 0.05
    bl = jax.random.normal(ks[5], (1,), jnp.float32) * 0.05
    gv, gq, gl = jnp.float32(1.3), jnp.float32(0.9), jnp.float32(1.1)

    wv = _weight_norm_effective(wv_v, gv).T          # [Vd, H]
    wq = _weight_norm_effective(wq_v, gq).T          # [Qd, H]
    wl = _weight_norm_effective(wl_v, gl).T          # [Qd(=H), 1]
    return (wv, bv.reshape(1, -1), wq, bq.reshape(1, -1),
            wl, bl.reshape(1, 1))


def reference_forward(v, q, params):
    wv, bv, wq, bq, wl, bl = params
    v_proj = jax.nn.relu(v @ wv + bv)                       # [B,K,H]
    q_proj = jax.nn.relu(q @ wq + bq)[:, None, :]           # [B,1,H]
    joint = v_proj * q_proj
    logits = joint @ wl + bl                                # [B,K,1]
    return jax.nn.softmax(logits, axis=1)


def _bf16_cast_params(params):
    """Match the kernel's bf16 MXU path: only Wv/Wq are bf16-rounded."""
    wv, bv, wq, bq, wl, bl = params
    cast = lambda w: w.astype(jnp.bfloat16).astype(jnp.float32)
    return (cast(wv), bv, cast(wq), bq, wl, bl)


# ---------------------------------------------------------------------------
# Tests
# ---------------------------------------------------------------------------
if __name__ == "__main__":
    V_DIM = 16
    NUM_HID = 32
    Q_DIM = NUM_HID     # module's final Linear(q_dim, 1) requires q_dim == num_hid

    key = jax.random.PRNGKey(0)
    k_v, k_q, k_p, k_v2, k_q2 = jax.random.split(key, 5)
    params = init_params(k_p, V_DIM, Q_DIM, NUM_HID)

    # --- small single-tile case (B=2, K=8), f32 MXU path ------------------
    B, K = 2, 8
    v = jax.random.normal(k_v, (B, K, V_DIM), jnp.float32)
    q = jax.random.normal(k_q, (B, Q_DIM), jnp.float32)
    out = jax.block_until_ready(
        new_attention_forward(v, q, params, use_bf16=False))
    ref = reference_forward(v, q, params)
    assert out.shape == (B, K, 1), out.shape
    assert jnp.allclose(out, ref, atol=5e-3, rtol=1e-2), (
        float(jnp.max(jnp.abs(out - ref))))
    assert jnp.allclose(jnp.sum(out, axis=1), 1.0, atol=1e-2)

    # --- batch-tiled multi-step grid case (B=64 -> >=2 grid steps), default
    #     bf16 MXU path; compare against a bf16-cast reference. -------------
    B2, K2 = 64, 8
    v2 = jax.random.normal(k_v2, (B2, K2, V_DIM), jnp.float32)
    q2 = jax.random.normal(k_q2, (B2, Q_DIM), jnp.float32)
    out2 = jax.block_until_ready(new_attention_forward(v2, q2, params))
    ref2 = reference_forward(
        v2.astype(jnp.bfloat16).astype(jnp.float32),
        q2.astype(jnp.bfloat16).astype(jnp.float32),
        _bf16_cast_params(params))
    assert out2.shape == (B2, K2, 1), out2.shape
    assert jnp.allclose(out2, ref2, atol=5e-3, rtol=2e-2), (
        float(jnp.max(jnp.abs(out2 - ref2))))
    assert jnp.allclose(jnp.sum(out2, axis=1), 1.0, atol=1e-2)

    print("KERNEL_OK")
</pallas_src>

<mosaic_0001>
module attributes {stable_mosaic.version = 11 : i64} {
  func.func @_attention_kernel(%arg0: i32, %arg1: memref<16x16xf32, #tpu.memory_space<vmem>>, %arg2: memref<2x32xf32, #tpu.memory_space<vmem>>, %arg3: memref<16x32xf32, #tpu.memory_space<vmem>>, %arg4: memref<1x32xf32, #tpu.memory_space<vmem>>, %arg5: memref<32x32xf32, #tpu.memory_space<vmem>>, %arg6: memref<1x32xf32, #tpu.memory_space<vmem>>, %arg7: memref<1x32xf32, #tpu.memory_space<vmem>>, %arg8: memref<2x8xf32, #tpu.memory_space<vmem>>) attributes {dimension_semantics = [#tpu.dimension_semantics<parallel>], iteration_bounds = array<i64: 1>, scalar_prefetch = 0 : i64, scratch_operands = 0 : i64, tpu.core_type = #tpu.core_type<tc>, window_params = [{transform_indices = @transform_0, window_bounds = array<i64: 16, 16>}, {transform_indices = @transform_1, window_bounds = array<i64: 2, 32>}, {pipeline_mode = #tpu.pipeline_mode<synchronous>, transform_indices = @transform_2, window_bounds = array<i64: 16, 32>}, {pipeline_mode = #tpu.pipeline_mode<synchronous>, transform_indices = @transform_3, window_bounds = array<i64: 1, 32>}, {pipeline_mode = #tpu.pipeline_mode<synchronous>, transform_indices = @transform_4, window_bounds = array<i64: 32, 32>}, {pipeline_mode = #tpu.pipeline_mode<synchronous>, transform_indices = @transform_5, window_bounds = array<i64: 1, 32>}, {pipeline_mode = #tpu.pipeline_mode<synchronous>, transform_indices = @transform_6, window_bounds = array<i64: 1, 32>}, {transform_indices = @transform_7, window_bounds = array<i64: 2, 8>}]} {
    %c0 = arith.constant 0 : index
    %c0_0 = arith.constant 0 : index
    %0 = vector.load %arg1[%c0, %c0_0] : memref<16x16xf32, #tpu.memory_space<vmem>>, vector<16x16xf32>
    %c0_1 = arith.constant 0 : index
    %c0_2 = arith.constant 0 : index
    %1 = vector.load %arg3[%c0_1, %c0_2] : memref<16x32xf32, #tpu.memory_space<vmem>>, vector<16x32xf32>
    %cst = arith.constant dense<0.000000e+00> : vector<16x32xf32>
    %2 = tpu.matmul %0, %1, %cst {dimension_numbers = #tpu.dot_dimension_numbers<[1], [0], [0], [1], [0, 0, 1, 1], [], []>} : vector<16x16xf32>, vector<16x32xf32>, vector<16x32xf32> -> vector<16x32xf32>
    %c0_3 = arith.constant 0 : index
    %c0_4 = arith.constant 0 : index
    %3 = vector.load %arg4[%c0_3, %c0_4] : memref<1x32xf32, #tpu.memory_space<vmem>>, vector<1x32xf32>
    %4 = vector.broadcast %3 : vector<1x32xf32> to vector<16x32xf32>
    %5 = arith.addf %2, %4 : vector<16x32xf32>
    %cst_5 = arith.constant 0.000000e+00 : f32
    %6 = vector.broadcast %cst_5 : f32 to vector<16x32xf32>
    %7 = arith.maximumf %5, %6 : vector<16x32xf32>
    %c0_6 = arith.constant 0 : index
    %c0_7 = arith.constant 0 : index
    %8 = vector.load %arg2[%c0_6, %c0_7] : memref<2x32xf32, #tpu.memory_space<vmem>>, vector<2x32xf32>
    %c0_8 = arith.constant 0 : index
    %c0_9 = arith.constant 0 : index
    %9 = vector.load %arg5[%c0_8, %c0_9] : memref<32x32xf32, #tpu.memory_space<vmem>>, vector<32x32xf32>
    %cst_10 = arith.constant dense<0.000000e+00> : vector<2x32xf32>
    %10 = tpu.matmul %8, %9, %cst_10 {dimension_numbers = #tpu.dot_dimension_numbers<[1], [0], [0], [1], [0, 0, 1, 1], [], []>} : vector<2x32xf32>, vector<32x32xf32>, vector<2x32xf32> -> vector<2x32xf32>
    %c0_11 = arith.constant 0 : index
    %c0_12 = arith.constant 0 : index
    %11 = vector.load %arg6[%c0_11, %c0_12] : memref<1x32xf32, #tpu.memory_space<vmem>>, vector<1x32xf32>
    %12 = vector.broadcast %11 : vector<1x32xf32> to vector<2x32xf32>
    %13 = arith.addf %10, %12 : vector<2x32xf32>
    %cst_13 = arith.constant 0.000000e+00 : f32
    %14 = vector.broadcast %cst_13 : f32 to vector<2x32xf32>
    %15 = arith.maximumf %13, %14 : vector<2x32xf32>
    %c0_14 = arith.constant 0 : index
    %c0_15 = arith.constant 0 : index
    %16 = vector.load %arg7[%c0_14, %c0_15] : memref<1x32xf32, #tpu.memory_space<vmem>>, vector<1x32xf32>
    %17 = vector.broadcast %16 : vector<1x32xf32> to vector<2x32xf32>
    %18 = arith.mulf %15, %17 : vector<2x32xf32>
    %19 = vector.shape_cast %7 : vector<16x32xf32> to vector<2x8x32xf32>
    %20 = vector.shape_cast %18 : vector<2x32xf32> to vector<2x1x32xf32>
    %21 = vector.broadcast %20 : vector<2x1x32xf32> to vector<2x8x32xf32>
    %22 = arith.mulf %19, %21 : vector<2x8x32xf32>
    %cst_16 = arith.constant dense<0.000000e+00> : vector<2x8xf32>
    %23 = vector.multi_reduction <add>, %22, %cst_16 [2] : vector<2x8x32xf32> to vector<2x8xf32>
    %cst_17 = arith.constant dense<0xFF800000> : vector<2xf32>
    %24 = vector.multi_reduction <maximumf>, %23, %cst_17 [1] : vector<2x8xf32> to vector<2xf32>
    %25 = vector.shape_cast %24 : vector<2xf32> to vector<2x1xf32>
    %26 = vector.broadcast %25 : vector<2x1xf32> to vector<2x8xf32>
    %27 = arith.subf %23, %26 : vector<2x8xf32>
    %28 = math.exp %27 : vector<2x8xf32>
    %cst_18 = arith.constant dense<0.000000e+00> : vector<2xf32>
    %29 = vector.multi_reduction <add>, %28, %cst_18 [1] : vector<2x8xf32> to vector<2xf32>
    %30 = vector.shape_cast %29 : vector<2xf32> to vector<2x1xf32>
    %31 = tpu.reciprocal %30 {approx = true} : vector<2x1xf32> -> vector<2x1xf32>
    %32 = vector.broadcast %31 : vector<2x1xf32> to vector<2x8xf32>
    %33 = arith.mulf %28, %32 : vector<2x8xf32>
    %c0_19 = arith.constant 0 : index
    %c0_20 = arith.constant 0 : index
    %34 = vector.load %arg8[%c0_19, %c0_20] : memref<2x8xf32, #tpu.memory_space<vmem>>, vector<2x8xf32>
    tpu.vector_store %arg8[%c0_19, %c0_20], %33 {strides = array<i32>} : memref<2x8xf32, #tpu.memory_space<vmem>>, vector<2x8xf32>,
    return
  }
  func.func @transform_0(%arg0: i32) -> (i32, i32) {
    %c0_i32 = arith.constant 0 : i32
    %c0_i32_0 = arith.constant 0 : i32
    return %arg0, %c0_i32 : i32, i32
  }
  func.func @transform_1(%arg0: i32) -> (i32, i32) {
    %c0_i32 = arith.constant 0 : i32
    %c0_i32_0 = arith.constant 0 : i32
    return %arg0, %c0_i32 : i32, i32
  }
  func.func @transform_2(%arg0: i32) -> (i32, i32) {
    %c0_i32 = arith.constant 0 : i32
    %c0_i32_0 = arith.constant 0 : i32
    %c0_i32_1 = arith.constant 0 : i32
    return %c0_i32, %c0_i32_0 : i32, i32
  }
  func.func @transform_3(%arg0: i32) -> (i32, i32) {
    %c0_i32 = arith.constant 0 : i32
    %c0_i32_0 = arith.constant 0 : i32
    %c0_i32_1 = arith.constant 0 : i32
    return %c0_i32, %c0_i32_0 : i32, i32
  }
  func.func @transform_4(%arg0: i32) -> (i32, i32) {
    %c0_i32 = arith.constant 0 : i32
    %c0_i32_0 = arith.constant 0 : i32
    %c0_i32_1 = arith.constant 0 : i32
    return %c0_i32, %c0_i32_0 : i32, i32
  }
  func.func @transform_5(%arg0: i32) -> (i32, i32) {
    %c0_i32 = arith.constant 0 : i32
    %c0_i32_0 = arith.constant 0 : i32
    %c0_i32_1 = arith.constant 0 : i32
    return %c0_i32, %c0_i32_0 : i32, i32
  }
  func.func @transform_6(%arg0: i32) -> (i32, i32) {
    %c0_i32 = arith.constant 0 : i32
    %c0_i32_0 = arith.constant 0 : i32
    %c0_i32_1 = arith.constant 0 : i32
    return %c0_i32, %c0_i32_0 : i32, i32
  }
  func.func @transform_7(%arg0: i32) -> (i32, i32) {
    %c0_i32 = arith.constant 0 : i32
    %c0_i32_0 = arith.constant 0 : i32
    return %arg0, %c0_i32 : i32, i32
  }
}

module attributes {stable_mosaic.version = 11 : i64} {
  func.func @_attention_kernel(%arg0: i32, %arg1: memref<16x16xf32, #tpu.memory_space<vmem>>, %arg2: memref<2x32xf32, #tpu.memory_space<vmem>>, %arg3: memref<16x32xf32, #tpu.memory_space<vmem>>, %arg4: memref<1x32xf32, #tpu.memory_space<vmem>>, %arg5: memref<32x32xf32, #tpu.memory_space<vmem>>, %arg6: memref<1x32xf32, #tpu.memory_space<vmem>>, %arg7: memref<1x32xf32, #tpu.memory_space<vmem>>, %arg8: memref<2x8xf32, #tpu.memory_space<vmem>>) attributes {dimension_semantics = [#tpu.dimension_semantics<parallel>], iteration_bounds = array<i64: 1>, scalar_prefetch = 0 : i64, scratch_operands = 0 : i64, tpu.core_type = #tpu.core_type<tc>, window_params = [{transform_indices = @transform_0, window_bounds = array<i64: 16, 16>}, {transform_indices = @transform_1, window_bounds = array<i64: 2, 32>}, {pipeline_mode = #tpu.pipeline_mode<synchronous>, transform_indices = @transform_2, window_bounds = array<i64: 16, 32>}, {pipeline_mode = #tpu.pipeline_mode<synchronous>, transform_indices = @transform_3, window_bounds = array<i64: 1, 32>}, {pipeline_mode = #tpu.pipeline_mode<synchronous>, transform_indices = @transform_4, window_bounds = array<i64: 32, 32>}, {pipeline_mode = #tpu.pipeline_mode<synchronous>, transform_indices = @transform_5, window_bounds = array<i64: 1, 32>}, {pipeline_mode = #tpu.pipeline_mode<synchronous>, transform_indices = @transform_6, window_bounds = array<i64: 1, 32>}, {transform_indices = @transform_7, window_bounds = array<i64: 2, 8>}]} {
    %c0 = arith.constant 0 : index
    %c0_0 = arith.constant 0 : index
    %0 = vector.load %arg1[%c0, %c0_0] : memref<16x16xf32, #tpu.memory_space<vmem>>, vector<16x16xf32>
    %c0_1 = arith.constant 0 : index
    %c0_2 = arith.constant 0 : index
    %1 = vector.load %arg3[%c0_1, %c0_2] : memref<16x32xf32, #tpu.memory_space<vmem>>, vector<16x32xf32>
    %cst = arith.constant dense<0.000000e+00> : vector<16x32xf32>
    %2 = tpu.matmul %0, %1, %cst {dimension_numbers = #tpu.dot_dimension_numbers<[1], [0], [0], [1], [0, 0, 1, 1], [], []>} : vector<16x16xf32>, vector<16x32xf32>, vector<16x32xf32> -> vector<16x32xf32>
    %c0_3 = arith.constant 0 : index
    %c0_4 = arith.constant 0 : index
    %3 = vector.load %arg4[%c0_3, %c0_4] : memref<1x32xf32, #tpu.memory_space<vmem>>, vector<1x32xf32>
    %4 = vector.broadcast %3 : vector<1x32xf32> to vector<16x32xf32>
    %5 = arith.addf %2, %4 : vector<16x32xf32>
    %cst_5 = arith.constant 0.000000e+00 : f32
    %6 = vector.broadcast %cst_5 : f32 to vector<16x32xf32>
    %7 = arith.maximumf %5, %6 : vector<16x32xf32>
    %c0_6 = arith.constant 0 : index
    %c0_7 = arith.constant 0 : index
    %8 = vector.load %arg2[%c0_6, %c0_7] : memref<2x32xf32, #tpu.memory_space<vmem>>, vector<2x32xf32>
    %c0_8 = arith.constant 0 : index
    %c0_9 = arith.constant 0 : index
    %9 = vector.load %arg5[%c0_8, %c0_9] : memref<32x32xf32, #tpu.memory_space<vmem>>, vector<32x32xf32>
    %cst_10 = arith.constant dense<0.000000e+00> : vector<2x32xf32>
    %10 = tpu.matmul %8, %9, %cst_10 {dimension_numbers = #tpu.dot_dimension_numbers<[1], [0], [0], [1], [0, 0, 1, 1], [], []>} : vector<2x32xf32>, vector<32x32xf32>, vector<2x32xf32> -> vector<2x32xf32>
    %c0_11 = arith.constant 0 : index
    %c0_12 = arith.constant 0 : index
    %11 = vector.load %arg6[%c0_11, %c0_12] : memref<1x32xf32, #tpu.memory_space<vmem>>, vector<1x32xf32>
    %12 = vector.broadcast %11 : vector<1x32xf32> to vector<2x32xf32>
    %13 = arith.addf %10, %12 : vector<2x32xf32>
    %cst_13 = arith.constant 0.000000e+00 : f32
    %14 = vector.broadcast %cst_13 : f32 to vector<2x32xf32>
    %15 = arith.maximumf %13, %14 : vector<2x32xf32>
    %c0_14 = arith.constant 0 : index
    %c0_15 = arith.constant 0 : index
    %16 = vector.load %arg7[%c0_14, %c0_15] : memref<1x32xf32, #tpu.memory_space<vmem>>, vector<1x32xf32>
    %17 = vector.broadcast %16 : vector<1x32xf32> to vector<2x32xf32>
    %18 = arith.mulf %15, %17 : vector<2x32xf32>
    %19 = vector.shape_cast %7 : vector<16x32xf32> to vector<2x8x32xf32>
    %20 = vector.shape_cast %18 : vector<2x32xf32> to vector<2x1x32xf32>
    %21 = vector.broadcast %20 : vector<2x1x32xf32> to vector<2x8x32xf32>
    %22 = arith.mulf %19, %21 : vector<2x8x32xf32>
    %cst_16 = arith.constant dense<0.000000e+00> : vector<2x8xf32>
    %23 = vector.multi_reduction <add>, %22, %cst_16 [2] : vector<2x8x32xf32> to vector<2x8xf32>
    %cst_17 = arith.constant dense<0xFF800000> : vector<2xf32>
    %24 = vector.multi_reduction <maximumf>, %23, %cst_17 [1] : vector<2x8xf32> to vector<2xf32>
    %25 = vector.shape_cast %24 : vector<2xf32> to vector<2x1xf32>
    %26 = vector.broadcast %25 : vector<2x1xf32> to vector<2x8xf32>
    %27 = arith.subf %23, %26 : vector<2x8xf32>
    %28 = math.exp %27 : vector<2x8xf32>
    %cst_18 = arith.constant dense<0.000000e+00> : vector<2xf32>
    %29 = vector.multi_reduction <add>, %28, %cst_18 [1] : vector<2x8xf32> to vector<2xf32>
    %30 = vector.shape_cast %29 : vector<2xf32> to vector<2x1xf32>
    %31 = tpu.reciprocal %30 {approx = true} : vector<2x1xf32> -> vector<2x1xf32>
    %32 = vector.broadcast %31 : vector<2x1xf32> to vector<2x8xf32>
    %33 = arith.mulf %28, %32 : vector<2x8xf32>
    %c0_19 = arith.constant 0 : index
    %c0_20 = arith.constant 0 : index
    %34 = vector.load %arg8[%c0_19, %c0_20] : memref<2x8xf32, #tpu.memory_space<vmem>>, vector<2x8xf32>
    tpu.vector_store %arg8[%c0_19, %c0_20], %33 {strides = array<i32>} : memref<2x8xf32, #tpu.memory_space<vmem>>, vector<2x8xf32>,
    return
  }
  func.func @transform_0(%arg0: i32) -> (i32, i32) {
    %c0_i32 = arith.constant 0 : i32
    %c0_i32_0 = arith.constant 0 : i32
    return %arg0, %c0_i32 : i32, i32
  }
  func.func @transform_1(%arg0: i32) -> (i32, i32) {
    %c0_i32 = arith.constant 0 : i32
    %c0_i32_0 = arith.constant 0 : i32
    return %arg0, %c0_i32 : i32, i32
  }
  func.func @transform_2(%arg0: i32) -> (i32, i32) {
    %c0_i32 = arith.constant 0 : i32
    %c0_i32_0 = arith.constant 0 : i32
    %c0_i32_1 = arith.constant 0 : i32
    return %c0_i32, %c0_i32_0 : i32, i32
  }
  func.func @transform_3(%arg0: i32) -> (i32, i32) {
    %c0_i32 = arith.constant 0 : i32
    %c0_i32_0 = arith.constant 0 : i32
    %c0_i32_1 = arith.constant 0 : i32
    return %c0_i32, %c0_i32_0 : i32, i32
  }
  func.func @transform_4(%arg0: i32) -> (i32, i32) {
    %c0_i32 = arith.constant 0 : i32
    %c0_i32_0 = arith.constant 0 : i32
    %c0_i32_1 = arith.constant 0 : i32
    return %c0_i32, %c0_i32_0 : i32, i32
  }
  func.func @transform_5(%arg0: i32) -> (i32, i32) {
    %c0_i32 = arith.constant 0 : i32
    %c0_i32_0 = arith.constant 0 : i32
    %c0_i32_1 = arith.constant 0 : i32
    return %c0_i32, %c0_i32_0 : i32, i32
  }
  func.func @transform_6(%arg0: i32) -> (i32, i32) {
    %c0_i32 = arith.constant 0 : i32
    %c0_i32_0 = arith.constant 0 : i32
    %c0_i32_1 = arith.constant 0 : i32
    return %c0_i32, %c0_i32_0 : i32, i32
  }
  func.func @transform_7(%arg0: i32) -> (i32, i32) {
    %c0_i32 = arith.constant 0 : i32
    %c0_i32_0 = arith.constant 0 : i32
    return %arg0, %c0_i32 : i32, i32
  }
}

</mosaic_0001>

<llo_original>
// kernel: tpu_custom_call.1
$region0: #{tpu_custom_call.1}
  #allocation0 [shape = 'u32[]', space=smem, size = 0x4, offset = 0x4, fixed_abs, tag = 'smem constant byte address 0x4 - core index']
  #allocation1 [shape = 'u32[72,128]{1,0:T(1,128)}', space=vmem, size = 0x9000, scoped, tag = 'internal scratch']
  %s0 = inlined_call_operand.hbm [shape: f32[16,16], index: 0, kind: input, shape index: {}]
  %s1 = inlined_call_operand.hbm [shape: f32[2,32], index: 1, kind: input, shape index: {}]
  %s2 = inlined_call_operand.hbm [shape: f32[16,32], index: 2, kind: input, shape index: {}]
  %s3 = inlined_call_operand.vmem [shape: f32[1,32], index: 3, kind: input, shape index: {}]
  %s4 = inlined_call_operand.hbm [shape: f32[32,32], index: 4, kind: input, shape index: {}]
  %s5 = inlined_call_operand.vmem [shape: f32[1,32], index: 5, kind: input, shape index: {}]
  %s6 = inlined_call_operand.vmem [shape: f32[1,32], index: 6, kind: input, shape index: {}]
  %s7 = inlined_call_operand.hbm [shape: f32[2,8], index: 7, kind: output, shape index: {}]
  %s8 = sld [smem:[#allocation0]]
  $region54: #{tpu_custom_call.1} parent=0
    _
  %s10 = ssub.s32 1, %s8
  %s11 = scalar_select 0, %s10, %s8
  $region1: #{tpu_custom_call.1} parent=0
    #allocation2 [shape = 'u8[8192]{0}', space=vmem, size = 0x2000, scoped, tag = 'input window, operand 0, single buffered']
    #allocation3 [shape = 's32[1]{0}', space=sflag, size = 0x4, scoped, tag = 'scoped memory for tpu_custom_call.1']
    #allocation4 [shape = 's32[1]{0}', space=sflag, size = 0x4, scoped, tag = 'scoped memory for tpu_custom_call.1']
    #allocation5 [shape = 'u8[1024]{0}', space=vmem, size = 0x400, scoped, tag = 'input window, operand 1, single buffered']
    #allocation6 [shape = 's32[1]{0}', space=sflag, size = 0x4, scoped, tag = 'scoped memory for tpu_custom_call.1']
    #allocation7 [shape = 'u8[8192]{0}', space=vmem, size = 0x2000, scoped, tag = 'input window, operand 2, single buffered']
    #allocation8 [shape = 'u8[16384]{0}', space=vmem, size = 0x4000, scoped, tag = 'input window, operand 4, single buffered']
    #allocation9 [shape = 's32[1]{0}', space=sflag, size = 0x4, scoped, tag = 'scoped memory for tpu_custom_call.1']
    #allocation10 [shape = 'u8[1024]{0}', space=vmem, size = 0x400, scoped, tag = 'output window, operand 0, single buffered']
    %12 = vsyncpa [#allocation3], 0
    %13 = vsyncpa [#allocation6], 0
    %14 = vsyncpa [#allocation9], 0
    %15 = vsyncpa [#allocation4], 0
    // Predicated region
    $region2: #{tpu_custom_call.1} parent=1 // pred_check
      _
    $region3: #{tpu_custom_call.1} parent=1 // pred_check_branch
      %17 = sbr.rel (0) target = $region5
    $region4: #{tpu_custom_call.1} parent=1 // pred_region
      %19 = vsyncadd [#allocation3], 0
      %s20 = sshll.u32 %s0, 4
      %s21 = int_to_ptr.hbm [resolvable:$true] %s20
      %s22 = sshll.u32 [#allocation2], 4
      %s23 = int_to_ptr.vmem [resolvable:$true] %s22
      %28 = dma.hbm_to_vmem [thread:$0]  %s21, 256, %s23, [#allocation3], 128, 128, 8
    $region5: #{tpu_custom_call.1} parent=1 // pred_fallthru
      _
    // Predicated region
    $region6: #{tpu_custom_call.1} parent=1 // pred_check
      _
    $region7: #{tpu_custom_call.1} parent=1 // pred_check_branch
      %30 = sbr.rel (0) target = $region9
    $region8: #{tpu_custom_call.1} parent=1 // pred_region
      %32 = vsyncadd [#allocation6], 0
      %s34 = sshll.u32 %s1, 4
      %s35 = int_to_ptr.hbm [resolvable:$true] %s34
      %s36 = sshll.u32 [#allocation5], 4
      %s37 = int_to_ptr.vmem [resolvable:$true] %s36
      %39 = dma.hbm_to_vmem [thread:$0]  %s35, 32, %s37, [#allocation6]
    $region9: #{tpu_custom_call.1} parent=1 // pred_fallthru
      _
    // Predicated region
    $region10: #{tpu_custom_call.1} parent=1 // pred_check
      _
    $region11: #{tpu_custom_call.1} parent=1 // pred_check_branch
      %41 = sbr.rel (0) target = $region13
    $region12: #{tpu_custom_call.1} parent=1 // pred_region
      %43 = vsyncadd [#allocation6], 0
      %s44 = sshll.u32 %s2, 4
      %s45 = int_to_ptr.hbm [resolvable:$true] %s44
      %s46 = sshll.u32 [#allocation7], 4
      %s47 = int_to_ptr.vmem [resolvable:$true] %s46
      %52 = dma.hbm_to_vmem [thread:$0]  %s45, 256, %s47, [#allocation6], 128, 128, 8
    $region13: #{tpu_custom_call.1} parent=1 // pred_fallthru
      _
    // Predicated region
    $region14: #{tpu_custom_call.1} parent=1 // pred_check
      _
    $region15: #{tpu_custom_call.1} parent=1 // pred_check_branch
      %54 = sbr.rel (0) target = $region17
    $region16: #{tpu_custom_call.1} parent=1 // pred_region
      _
    $region17: #{tpu_custom_call.1} parent=1 // pred_fallthru
      _
    // Predicated region
    $region18: #{tpu_custom_call.1} parent=1 // pred_check
      _
    $region19: #{tpu_custom_call.1} parent=1 // pred_check_branch
      %56 = sbr.rel (0) target = $region21
    $region20: #{tpu_custom_call.1} parent=1 // pred_region
      %58 = vsyncadd [#allocation9], 0
      %s59 = sshll.u32 %s4, 4
      %s60 = int_to_ptr.hbm [resolvable:$true] %s59
      %s61 = sshll.u32 [#allocation8], 4
      %s62 = int_to_ptr.vmem [resolvable:$true] %s61
      %67 = dma.hbm_to_vmem [thread:$0]  %s60, 512, %s62, [#allocation9], 128, 128, 8
    $region21: #{tpu_custom_call.1} parent=1 // pred_fallthru
      _
    // Predicated region
    $region22: #{tpu_custom_call.1} parent=1 // pred_check
      _
    $region23: #{tpu_custom_call.1} parent=1 // pred_check_branch
      %69 = sbr.rel (0) target = $region25
    $region24: #{tpu_custom_call.1} parent=1 // pred_region
      _
    $region25: #{tpu_custom_call.1} parent=1 // pred_fallthru
      _
    // Predicated region
    $region26: #{tpu_custom_call.1} parent=1 // pred_check
      _
    $region27: #{tpu_custom_call.1} parent=1 // pred_check_branch
      %71 = sbr.rel (0) target = $region29
    $region28: #{tpu_custom_call.1} parent=1 // pred_region
      _
    $region29: #{tpu_custom_call.1} parent=1 // pred_fallthru
      _
    // Predicated region
    $region30: #{tpu_custom_call.1} parent=1 // pred_check
      _
    $region31: #{tpu_custom_call.1} parent=1 // pred_check_branch
      %73 = sbr.rel (0) target = $region33
    $region32: #{tpu_custom_call.1} parent=1 // pred_region
      %75 = dma.done [#allocation3], 256
    $region33: #{tpu_custom_call.1} parent=1 // pred_fallthru
      _
    // Predicated region
    $region34: #{tpu_custom_call.1} parent=1 // pred_check
      _
    $region35: #{tpu_custom_call.1} parent=1 // pred_check_branch
      %77 = sbr.rel (0) target = $region37
    $region36: #{tpu_custom_call.1} parent=1 // pred_region
      %79 = dma.done [#allocation6], 32
    $region37: #{tpu_custom_call.1} parent=1 // pred_fallthru
      _
    // Predicated region
    $region38: #{tpu_custom_call.1} parent=1 // pred_check
      _
    $region39: #{tpu_custom_call.1} parent=1 // pred_check_branch
      %81 = sbr.rel (0) target = $region41
    $region40: #{tpu_custom_call.1} parent=1 // pred_region
      %83 = dma.done [#allocation6], 256
    $region41: #{tpu_custom_call.1} parent=1 // pred_fallthru
      _
    // Predicated region
    $region42: #{tpu_custom_call.1} parent=1 // pred_check
      _
    $region43: #{tpu_custom_call.1} parent=1 // pred_check_branch
      %85 = sbr.rel (0) target = $region45
    $region44: #{tpu_custom_call.1} parent=1 // pred_region
      %87 = dma.done [#allocation9], 512
    $region45: #{tpu_custom_call.1} parent=1 // pred_fallthru
      _
    %v88 = vld [vmem:[#allocation2] sm:$0xff]
    %v89 = vld [vmem:[#allocation2 + $0x8] sm:$0xff]
    %v90 = vld [vmem:[#allocation7] sm:$0xff]
    %v91 = vld [vmem:[#allocation7 + $0x8] sm:$0xff]
    %v92 = vld [vmem:[%s3] sm:$0x1]
    %v94 = vperm.slane %v92, 0
    %vm96 = vcmask 130048
    %v98 = vsel %vm96, %v88, 0
    %v101 = vsel %vm96, %v89, 0
    %103 = vmatpush.msra.mxu0 0.0
    %104 = vmatpush.msra.mxu0 0.0
    %105 = vmatpush.msra.mxu0 0.0
    %106 = vmatpush.msra.mxu0 0.0
    %107 = vmatpush.msra.mxu0 0.0
    %108 = vmatpush.msra.mxu0 0.0
    %109 = vmatpush.msra.mxu0 0.0
    %110 = vmatpush.msra.mxu0 0.0
    %111 = vmatpush.msra.mxu0 0.0
    %112 = vmatpush.msra.mxu0 0.0
    %113 = vmatpush.msra.mxu0 0.0
    %114 = vmatpush.msra.mxu0 0.0
    %115 = vmatpush.msra.mxu0 0.0
    %116 = vmatpush.msra.mxu0 0.0
    %117 = vmatpush.msra.mxu0 %v91
    %118 = vmatpush.msra.mxu0 %v90
    %119 = vmatmul.f32.gmra.mxu0 %v98
    %v120 = vpop.f32.mrf.mxu0
    %v121 = vadd.f32 %v94, %v120
    %122 = vmatmul.f32.gmra.mxu0 %v101
    %v123 = vpop.f32.mrf.mxu0
    %v124 = vadd.f32 %v94, %v123
    %125 = vdwg.mxu0
    %v126 = vmax.f32 %v121, 0.0
    %v127 = vmax.f32 %v124, 0.0
    %v128 = vld [vmem:[#allocation5] sm:$0x3]
    %v129 = vld [vmem:[#allocation8] sm:$0xff]
    %v130 = vld [vmem:[#allocation8 + $0x8] sm:$0xff]
    %v131 = vld [vmem:[#allocation8 + $0x10] sm:$0xff]
    %v132 = vld [vmem:[#allocation8 + $0x18] sm:$0xff]
    %v133 = vld [vmem:[%s5] sm:$0x1]
    %v135 = vperm.slane %v133, 0
    %vm137 = vcmask 261120
    %v139 = vsel %vm137, %v128, 0
    %141 = vmatpush.msra.mxu0 0.0
    %142 = vmatpush.msra.mxu0 0.0
    %143 = vmatpush.msra.mxu0 0.0
    %144 = vmatpush.msra.mxu0 0.0
    %145 = vmatpush.msra.mxu0 0.0
    %146 = vmatpush.msra.mxu0 0.0
    %147 = vmatpush.msra.mxu0 0.0
    %148 = vmatpush.msra.mxu0 0.0
    %149 = vmatpush.msra.mxu0 0.0
    %150 = vmatpush.msra.mxu0 0.0
    %151 = vmatpush.msra.mxu0 0.0
    %152 = vmatpush.msra.mxu0 0.0
    %153 = vmatpush.msra.mxu0 %v132
    %154 = vmatpush.msra.mxu0 %v131
    %155 = vmatpush.msra.mxu0 %v130
    %156 = vmatpush.msra.mxu0 %v129
    %157 = vmatmul.f32.gmra.mxu0 %v139
    %v158 = vpop.f32.mrf.mxu0
    %v159 = vadd.f32 %v135, %v158
    %160 = vdwg.mxu0
    %v161 = vmax.f32 %v159, 0.0
    %v162 = vld [vmem:[%s6] sm:$0x1]
    %v164 = vperm.slane %v162, 0
    %v166 = vmul.f32 %v161, %v164
    %v168 = vrot.slane %v166, 1
    %v169 = vperm.slane %v166, 0
    %v170 = vperm.slane %v168, 0
    %v173 = vmul.f32 %v126, %v169
    %v174 = vmul.f32 %v127, %v170
    %v175 = vsel %vm137, %v173, 0.0
    %176 = vadd.xlane.f32.xlu0 %v175
    %v177 = vpop.xlane.xlu0 %176
    %v178 = vsel %vm137, %v174, 0.0
    %179 = vadd.xlane.f32.xlu0 %v178
    %v180 = vpop.xlane.xlu0 %179
    %v183 = vlaneseq
    %v184 = vand.u32 %v183, 127
    %v185 = vperm.slane %v177, %v184
    %v186 = vperm.slane %v180, %v184
    %vm187 = vcmask 1041409
    %v188 = vsel %vm187, %v186, %v185
    %vm190 = vcmask 58368
    %v191 = vsel %vm190, %v188, -inf
    %192 = vmax.xlane.f32.xlu0 %v191
    %v193 = vpop.xlane.xlu0 %192
    %v195 = vperm.slane %v193, 0
    %v196 = vperm.slane %v193, 1
    %v199 = vsub.f32 %v177, %v195
    %v200 = vsub.f32 %v180, %v196
    %v201 = vmul.f32 %v199, 1.442695
    %v202 = vpow.pop %v201
    %v203 = vmul.f32 %v200, 1.442695
    %v204 = vpow.pop %v203
    %207 = vset.pattern.permute.xlu0 0
    %208 = vperm.xlu0 %207, %v202
    %v209 = vpop.permute.xlu0 %208
    %210 = vset.pattern.permute.xlu0 0
    %211 = vperm.xlu0 %210, %v204
    %v212 = vpop.permute.xlu0 %211
    %v213 = vperm.slane %v209, %v184
    %v214 = vperm.slane %v212, %v184
    %v215 = vsel %vm187, %v214, %v213
    %v217 = vsel %vm190, %v215, 0.0
    %218 = vadd.xlane.f32.xlu0 %v217
    %v219 = vpop.xlane.xlu0 %218
    %v220 = vrcp.pop %v219
    %v222 = vperm.slane %v220, 0
    %v223 = vperm.slane %v220, 1
    %v226 = vmul.f32 %v202, %v222
    %v227 = vmul.f32 %v204, %v223
    %230 = vset.pattern.permute.xlu0 0
    %231 = vperm.xlu0 %230, %v226
    %v232 = vpop.permute.xlu0 %231
    %233 = vset.pattern.permute.xlu0 0
    %234 = vperm.xlu0 %233, %v227
    %v235 = vpop.permute.xlu0 %234
    %v236 = vperm.slane %v232, %v184
    %v237 = vperm.slane %v235, %v184
    %v238 = vsel %vm187, %v237, %v236
    %240 = vst.msk [vmem:[#allocation10] sm:$0x3] %vm190, %v238
    // Predicated region
    $region46: #{tpu_custom_call.1} parent=1 // pred_check
      _
    $region47: #{tpu_custom_call.1} parent=1 // pred_check_branch
      %242 = sbr.rel (0) target = $region49
    $region48: #{tpu_custom_call.1} parent=1 // pred_region
      %244 = vsyncadd [#allocation4], 0
      %s246 = sshll.u32 [#allocation10], 4
      %s247 = int_to_ptr.vmem [resolvable:$true] %s246
      %s248 = sshll.u32 %s7, 4
      %s249 = int_to_ptr.hbm [resolvable:$true] %s248
      %251 = dma.vmem_to_hbm [thread:$0]  %s247, 32, %s249, [#allocation4]
    $region49: #{tpu_custom_call.1} parent=1 // pred_fallthru
      _
    // Predicated region
    $region50: #{tpu_custom_call.1} parent=1 // pred_check
      _
    $region51: #{tpu_custom_call.1} parent=1 // pred_check_branch
      %253 = sbr.rel (0) target = $region53
    $region52: #{tpu_custom_call.1} parent=1 // pred_region
      %255 = dma.done [#allocation4], 32
    $region53: #{tpu_custom_call.1} parent=1 // pred_fallthru
      _
    %256 = vsyncpa [#allocation3], 1
    %257 = vsyncpa [#allocation6], 1
    %258 = vsyncpa [#allocation9], 1
    %259 = vsyncpa [#allocation4], 1

// kernel: tpu_custom_call.1
$region0: #{tpu_custom_call.1}
  #allocation0 [shape = 'u32[]', space=smem, size = 0x4, offset = 0x4, fixed_abs, tag = 'smem constant byte address 0x4 - core index']
  #allocation1 [shape = 'u32[72,128]{1,0:T(1,128)}', space=vmem, size = 0x9000, scoped, tag = 'internal scratch']
  %s0 = inlined_call_operand.hbm [shape: f32[16,16], index: 0, kind: input, shape index: {}]
  %s1 = inlined_call_operand.hbm [shape: f32[2,32], index: 1, kind: input, shape index: {}]
  %s2 = inlined_call_operand.hbm [shape: f32[16,32], index: 2, kind: input, shape index: {}]
  %s3 = inlined_call_operand.vmem [shape: f32[1,32], index: 3, kind: input, shape index: {}]
  %s4 = inlined_call_operand.hbm [shape: f32[32,32], index: 4, kind: input, shape index: {}]
  %s5 = inlined_call_operand.vmem [shape: f32[1,32], index: 5, kind: input, shape index: {}]
  %s6 = inlined_call_operand.vmem [shape: f32[1,32], index: 6, kind: input, shape index: {}]
  %s7 = inlined_call_operand.hbm [shape: f32[2,8], index: 7, kind: output, shape index: {}]
  %s8 = sld [smem:[#allocation0]]
  $region54: #{tpu_custom_call.1} parent=0
    _
  %s10 = ssub.s32 1, %s8
  %s11 = scalar_select 0, %s10, %s8
  $region1: #{tpu_custom_call.1} parent=0
    #allocation2 [shape = 'u8[8192]{0}', space=vmem, size = 0x2000, scoped, tag = 'input window, operand 0, single buffered']
    #allocation3 [shape = 's32[1]{0}', space=sflag, size = 0x4, scoped, tag = 'scoped memory for tpu_custom_call.1']
    #allocation4 [shape = 's32[1]{0}', space=sflag, size = 0x4, scoped, tag = 'scoped memory for tpu_custom_call.1']
    #allocation5 [shape = 'u8[1024]{0}', space=vmem, size = 0x400, scoped, tag = 'input window, operand 1, single buffered']
    #allocation6 [shape = 's32[1]{0}', space=sflag, size = 0x4, scoped, tag = 'scoped memory for tpu_custom_call.1']
    #allocation7 [shape = 'u8[8192]{0}', space=vmem, size = 0x2000, scoped, tag = 'input window, operand 2, single buffered']
    #allocation8 [shape = 'u8[16384]{0}', space=vmem, size = 0x4000, scoped, tag = 'input window, operand 4, single buffered']
    #allocation9 [shape = 's32[1]{0}', space=sflag, size = 0x4, scoped, tag = 'scoped memory for tpu_custom_call.1']
    #allocation10 [shape = 'u8[1024]{0}', space=vmem, size = 0x400, scoped, tag = 'output window, operand 0, single buffered']
    %12 = vsyncpa [#allocation3], 0
    %13 = vsyncpa [#allocation6], 0
    %14 = vsyncpa [#allocation9], 0
    %15 = vsyncpa [#allocation4], 0
    // Predicated region
    $region2: #{tpu_custom_call.1} parent=1 // pred_check
      _
    $region3: #{tpu_custom_call.1} parent=1 // pred_check_branch
      %17 = sbr.rel (0) target = $region5
    $region4: #{tpu_custom_call.1} parent=1 // pred_region
      %19 = vsyncadd [#allocation3], 0
      %s20 = sshll.u32 %s0, 4
      %s21 = int_to_ptr.hbm [resolvable:$true] %s20
      %s22 = sshll.u32 [#allocation2], 4
      %s23 = int_to_ptr.vmem [resolvable:$true] %s22
      %28 = dma.hbm_to_vmem [thread:$0]  %s21, 256, %s23, [#allocation3], 128, 128, 8
    $region5: #{tpu_custom_call.1} parent=1 // pred_fallthru
      _
    // Predicated region
    $region6: #{tpu_custom_call.1} parent=1 // pred_check
      _
    $region7: #{tpu_custom_call.1} parent=1 // pred_check_branch
      %30 = sbr.rel (0) target = $region9
    $region8: #{tpu_custom_call.1} parent=1 // pred_region
      %32 = vsyncadd [#allocation6], 0
      %s34 = sshll.u32 %s1, 4
      %s35 = int_to_ptr.hbm [resolvable:$true] %s34
      %s36 = sshll.u32 [#allocation5], 4
      %s37 = int_to_ptr.vmem [resolvable:$true] %s36
      %39 = dma.hbm_to_vmem [thread:$0]  %s35, 32, %s37, [#allocation6]
    $region9: #{tpu_custom_call.1} parent=1 // pred_fallthru
      _
    // Predicated region
    $region10: #{tpu_custom_call.1} parent=1 // pred_check
      _
    $region11: #{tpu_custom_call.1} parent=1 // pred_check_branch
      %41 = sbr.rel (0) target = $region13
    $region12: #{tpu_custom_call.1} parent=1 // pred_region
      %43 = vsyncadd [#allocation6], 0
      %s44 = sshll.u32 %s2, 4
      %s45 = int_to_ptr.hbm [resolvable:$true] %s44
      %s46 = sshll.u32 [#allocation7], 4
      %s47 = int_to_ptr.vmem [resolvable:$true] %s46
      %52 = dma.hbm_to_vmem [thread:$0]  %s45, 256, %s47, [#allocation6], 128, 128, 8
    $region13: #{tpu_custom_call.1} parent=1 // pred_fallthru
      _
    // Predicated region
    $region14: #{tpu_custom_call.1} parent=1 // pred_check
      _
    $region15: #{tpu_custom_call.1} parent=1 // pred_check_branch
      %54 = sbr.rel (0) target = $region17
    $region16: #{tpu_custom_call.1} parent=1 // pred_region
      _
    $region17: #{tpu_custom_call.1} parent=1 // pred_fallthru
      _
    // Predicated region
    $region18: #{tpu_custom_call.1} parent=1 // pred_check
      _
    $region19: #{tpu_custom_call.1} parent=1 // pred_check_branch
      %56 = sbr.rel (0) target = $region21
    $region20: #{tpu_custom_call.1} parent=1 // pred_region
      %58 = vsyncadd [#allocation9], 0
      %s59 = sshll.u32 %s4, 4
      %s60 = int_to_ptr.hbm [resolvable:$true] %s59
      %s61 = sshll.u32 [#allocation8], 4
      %s62 = int_to_ptr.vmem [resolvable:$true] %s61
      %67 = dma.hbm_to_vmem [thread:$0]  %s60, 512, %s62, [#allocation9], 128, 128, 8
    $region21: #{tpu_custom_call.1} parent=1 // pred_fallthru
      _
    // Predicated region
    $region22: #{tpu_custom_call.1} parent=1 // pred_check
      _
    $region23: #{tpu_custom_call.1} parent=1 // pred_check_branch
      %69 = sbr.rel (0) target = $region25
    $region24: #{tpu_custom_call.1} parent=1 // pred_region
      _
    $region25: #{tpu_custom_call.1} parent=1 // pred_fallthru
      _
    // Predicated region
    $region26: #{tpu_custom_call.1} parent=1 // pred_check
      _
    $region27: #{tpu_custom_call.1} parent=1 // pred_check_branch
      %71 = sbr.rel (0) target = $region29
    $region28: #{tpu_custom_call.1} parent=1 // pred_region
      _
    $region29: #{tpu_custom_call.1} parent=1 // pred_fallthru
      _
    // Predicated region
    $region30: #{tpu_custom_call.1} parent=1 // pred_check
      _
    $region31: #{tpu_custom_call.1} parent=1 // pred_check_branch
      %73 = sbr.rel (0) target = $region33
    $region32: #{tpu_custom_call.1} parent=1 // pred_region
      %75 = dma.done [#allocation3], 256
    $region33: #{tpu_custom_call.1} parent=1 // pred_fallthru
      _
    // Predicated region
    $region34: #{tpu_custom_call.1} parent=1 // pred_check
      _
    $region35: #{tpu_custom_call.1} parent=1 // pred_check_branch
      %77 = sbr.rel (0) target = $region37
    $region36: #{tpu_custom_call.1} parent=1 // pred_region
      %79 = dma.done [#allocation6], 32
    $region37: #{tpu_custom_call.1} parent=1 // pred_fallthru
      _
    // Predicated region
    $region38: #{tpu_custom_call.1} parent=1 // pred_check
      _
    $region39: #{tpu_custom_call.1} parent=1 // pred_check_branch
      %81 = sbr.rel (0) target = $region41
    $region40: #{tpu_custom_call.1} parent=1 // pred_region
      %83 = dma.done [#allocation6], 256
    $region41: #{tpu_custom_call.1} parent=1 // pred_fallthru
      _
    // Predicated region
    $region42: #{tpu_custom_call.1} parent=1 // pred_check
      _
    $region43: #{tpu_custom_call.1} parent=1 // pred_check_branch
      %85 = sbr.rel (0) target = $region45
    $region44: #{tpu_custom_call.1} parent=1 // pred_region
      %87 = dma.done [#allocation9], 512
    $region45: #{tpu_custom_call.1} parent=1 // pred_fallthru
      _
    %v88 = vld [vmem:[#allocation2] sm:$0xff]
    %v89 = vld [vmem:[#allocation2 + $0x8] sm:$0xff]
    %v90 = vld [vmem:[#allocation7] sm:$0xff]
    %v91 = vld [vmem:[#allocation7 + $0x8] sm:$0xff]
    %v92 = vld [vmem:[%s3] sm:$0x1]
    %v94 = vperm.slane %v92, 0
    %vm96 = vcmask 130048
    %v98 = vsel %vm96, %v88, 0
    %v101 = vsel %vm96, %v89, 0
    %103 = vmatpush.msra.mxu0 0.0
    %104 = vmatpush.msra.mxu0 0.0
    %105 = vmatpush.msra.mxu0 0.0
    %106 = vmatpush.msra.mxu0 0.0
    %107 = vmatpush.msra.mxu0 0.0
    %108 = vmatpush.msra.mxu0 0.0
    %109 = vmatpush.msra.mxu0 0.0
    %110 = vmatpush.msra.mxu0 0.0
    %111 = vmatpush.msra.mxu0 0.0
    %112 = vmatpush.msra.mxu0 0.0
    %113 = vmatpush.msra.mxu0 0.0
    %114 = vmatpush.msra.mxu0 0.0
    %115 = vmatpush.msra.mxu0 0.0
    %116 = vmatpush.msra.mxu0 0.0
    %117 = vmatpush.msra.mxu0 %v91
    %118 = vmatpush.msra.mxu0 %v90
    %119 = vmatmul.f32.gmra.mxu0 %v98
    %v120 = vpop.f32.mrf.mxu0
    %v121 = vadd.f32 %v94, %v120
    %122 = vmatmul.f32.gmra.mxu0 %v101
    %v123 = vpop.f32.mrf.mxu0
    %v124 = vadd.f32 %v94, %v123
    %125 = vdwg.mxu0
    %v126 = vmax.f32 %v121, 0.0
    %v127 = vmax.f32 %v124, 0.0
    %v128 = vld [vmem:[#allocation5] sm:$0x3]
    %v129 = vld [vmem:[#allocation8] sm:$0xff]
    %v130 = vld [vmem:[#allocation8 + $0x8] sm:$0xff]
    %v131 = vld [vmem:[#allocation8 + $0x10] sm:$0xff]
    %v132 = vld [vmem:[#allocation8 + $0x18] sm:$0xff]
    %v133 = vld [vmem:[%s5] sm:$0x1]
    %v135 = vperm.slane %v133, 0
    %vm137 = vcmask 261120
    %v139 = vsel %vm137, %v128, 0
    %141 = vmatpush.msra.mxu0 0.0
    %142 = vmatpush.msra.mxu0 0.0
    %143 = vmatpush.msra.mxu0 0.0
    %144 = vmatpush.msra.mxu0 0.0
    %145 = vmatpush.msra.mxu0 0.0
    %146 = vmatpush.msra.mxu0 0.0
    %147 = vmatpush.msra.mxu0 0.0
    %148 = vmatpush.msra.mxu0 0.0
    %149 = vmatpush.msra.mxu0 0.0
    %150 = vmatpush.msra.mxu0 0.0
    %151 = vmatpush.msra.mxu0 0.0
    %152 = vmatpush.msra.mxu0 0.0
    %153 = vmatpush.msra.mxu0 %v132
    %154 = vmatpush.msra.mxu0 %v131
    %155 = vmatpush.msra.mxu0 %v130
    %156 = vmatpush.msra.mxu0 %v129
    %157 = vmatmul.f32.gmra.mxu0 %v139
    %v158 = vpop.f32.mrf.mxu0
    %v159 = vadd.f32 %v135, %v158
    %160 = vdwg.mxu0
    %v161 = vmax.f32 %v159, 0.0
    %v162 = vld [vmem:[%s6] sm:$0x1]
    %v164 = vperm.slane %v162, 0
    %v166 = vmul.f32 %v161, %v164
    %v168 = vrot.slane %v166, 1
    %v169 = vperm.slane %v166, 0
    %v170 = vperm.slane %v168, 0
    %v173 = vmul.f32 %v126, %v169
    %v174 = vmul.f32 %v127, %v170
    %v175 = vsel %vm137, %v173, 0.0
    %176 = vadd.xlane.f32.xlu0 %v175
    %v177 = vpop.xlane.xlu0 %176
    %v178 = vsel %vm137, %v174, 0.0
    %179 = vadd.xlane.f32.xlu0 %v178
    %v180 = vpop.xlane.xlu0 %179
    %v183 = vlaneseq
    %v184 = vand.u32 %v183, 127
    %v185 = vperm.slane %v177, %v184
    %v186 = vperm.slane %v180, %v184
    %vm187 = vcmask 1041409
    %v188 = vsel %vm187, %v186, %v185
    %vm190 = vcmask 58368
    %v191 = vsel %vm190, %v188, -inf
    %192 = vmax.xlane.f32.xlu0 %v191
    %v193 = vpop.xlane.xlu0 %192
    %v195 = vperm.slane %v193, 0
    %v196 = vperm.slane %v193, 1
    %v199 = vsub.f32 %v177, %v195
    %v200 = vsub.f32 %v180, %v196
    %v201 = vmul.f32 %v199, 1.442695
    %v202 = vpow.pop %v201
    %v203 = vmul.f32 %v200, 1.442695
    %v204 = vpow.pop %v203
    %207 = vset.pattern.permute.xlu0 0
    %208 = vperm.xlu0 %207, %v202
    %v209 = vpop.permute.xlu0 %208
    %210 = vset.pattern.permute.xlu0 0
    %211 = vperm.xlu0 %210, %v204
    %v212 = vpop.permute.xlu0 %211
    %v213 = vperm.slane %v209, %v184
    %v214 = vperm.slane %v212, %v184
    %v215 = vsel %vm187, %v214, %v213
    %v217 = vsel %vm190, %v215, 0.0
    %218 = vadd.xlane.f32.xlu0 %v217
    %v219 = vpop.xlane.xlu0 %218
    %v220 = vrcp.pop %v219
    %v222 = vperm.slane %v220, 0
    %v223 = vperm.slane %v220, 1
    %v226 = vmul.f32 %v202, %v222
    %v227 = vmul.f32 %v204, %v223
    %230 = vset.pattern.permute.xlu0 0
    %231 = vperm.xlu0 %230, %v226
    %v232 = vpop.permute.xlu0 %231
    %233 = vset.pattern.permute.xlu0 0
    %234 = vperm.xlu0 %233, %v227
    %v235 = vpop.permute.xlu0 %234
    %v236 = vperm.slane %v232, %v184
    %v237 = vperm.slane %v235, %v184
    %v238 = vsel %vm187, %v237, %v236
    %240 = vst.msk [vmem:[#allocation10] sm:$0x3] %vm190, %v238
    // Predicated region
    $region46: #{tpu_custom_call.1} parent=1 // pred_check
      _
    $region47: #{tpu_custom_call.1} parent=1 // pred_check_branch
      %242 = sbr.rel (0) target = $region49
    $region48: #{tpu_custom_call.1} parent=1 // pred_region
      %244 = vsyncadd [#allocation4], 0
      %s246 = sshll.u32 [#allocation10], 4
      %s247 = int_to_ptr.vmem [resolvable:$true] %s246
      %s248 = sshll.u32 %s7, 4
      %s249 = int_to_ptr.hbm [resolvable:$true] %s248
      %251 = dma.vmem_to_hbm [thread:$0]  %s247, 32, %s249, [#allocation4]
    $region49: #{tpu_custom_call.1} parent=1 // pred_fallthru
      _
    // Predicated region
    $region50: #{tpu_custom_call.1} parent=1 // pred_check
      _
    $region51: #{tpu_custom_call.1} parent=1 // pred_check_branch
      %253 = sbr.rel (0) target = $region53
    $region52: #{tpu_custom_call.1} parent=1 // pred_region
      %255 = dma.done [#allocation4], 32
    $region53: #{tpu_custom_call.1} parent=1 // pred_fallthru
      _
    %256 = vsyncpa [#allocation3], 1
    %257 = vsyncpa [#allocation6], 1
    %258 = vsyncpa [#allocation9], 1
    %259 = vsyncpa [#allocation4], 1

</llo_original>
